<compile_context>
chip_gen: v7x
topology: tpu7x:2x2x1
jax: 0.10.0
libtpu: 0.0.40
codegen_flags: <defaults>
</compile_context>

<pallas_src>
import functools
import math

import jax
import jax.numpy as jnp
from jax.experimental import pallas as pl
from jax.experimental.pallas import tpu as pltpu


# ------------------------------ tiling helpers ------------------------------

def _tile(dim, target, align):
    """Largest tile <= target that divides dim and respects the alignment,
    falling back to the full dimension (always a legal block size)."""
    if dim <= target:
        return dim
    t = (target // align) * align
    while t >= align:
        if dim % t == 0:
            return t
        t -= align
    return dim


def _pick_heads_per_block(nh, dh):
    """Smallest head-group whose lane width is a multiple of 128; else all heads."""
    for c in range(1, nh + 1):
        if nh % c == 0 and (c * dh) % 128 == 0:
            return c
    return nh


# ----------------------------- Pallas kernels ------------------------------

def _linear_kernel(*refs, act, ln_eps):
    """y = act(x @ w + b); optionally followed by LayerNorm(y + residual)."""
    if ln_eps is not None:
        x_ref, w_ref, b_ref, res_ref, g_ref, bb_ref, o_ref = refs
    else:
        x_ref, w_ref, b_ref, o_ref = refs

    y = jnp.dot(x_ref[...], w_ref[...],
                preferred_element_type=jnp.float32) + b_ref[...]

    if act == "gelu":
        # TODO(synk): tanh approximation; HF BERT default is exact erf-GELU.
        y = 0.5 * y * (1.0 + jnp.tanh(
            jnp.sqrt(2.0 / jnp.pi) * (y + 0.044715 * y ** 3)))
    elif act == "tanh":
        y = jnp.tanh(y)

    if ln_eps is not None:
        y = y + res_ref[...]
        mu = jnp.mean(y, axis=-1, keepdims=True)
        var = jnp.mean((y - mu) ** 2, axis=-1, keepdims=True)
        y = (y - mu) * jax.lax.rsqrt(var + ln_eps) * g_ref[...] + bb_ref[...]

    o_ref[...] = y.astype(o_ref.dtype)


def linear(x, w, b, *, act="none", out_dtype=jnp.float32,
           residual=None, ln_gamma=None, ln_beta=None, ln_eps=None,
           tm=512, tn=512):
    """y = act(x @ w + b) [optionally LayerNorm(y + residual)].

    Full-K contraction (K always fits VMEM for BERT sizes), bf16 MXU operands,
    f32 accumulation. Grid = (N tiles, M tiles) with M innermost so the weight
    panel's block index is constant along the inner axis and stays VMEM-resident.
    """
    m, kdim = x.shape
    n = w.shape[1]
    fuse_ln = ln_gamma is not None
    if fuse_ln:
        tn = n                       # LayerNorm needs the full feature row
    tm = _tile(m, tm, 16)            # sublane-aligned (bf16-safe)
    tn = _tile(n, tn, 128)           # lane-aligned

    xb = x.astype(jnp.bfloat16)
    wb = w.astype(jnp.bfloat16)
    b2 = b.reshape(1, n).astype(jnp.float32)

    inputs = [xb, wb, b2]
    in_specs = [
        pl.BlockSpec((tm, kdim), lambda j, i: (i, 0)),   # activation panel
        pl.BlockSpec((kdim, tn), lambda j, i: (0, j)),   # weight panel (resident over i)
        pl.BlockSpec((1, tn), lambda j, i: (0, j)),
    ]
    if fuse_ln:
        inputs += [residual,
                   ln_gamma.reshape(1, n).astype(jnp.float32),
                   ln_beta.reshape(1, n).astype(jnp.float32)]
        in_specs += [
            pl.BlockSpec((tm, n), lambda j, i: (i, 0)),
            pl.BlockSpec((1, n), lambda j, i: (0, 0)),
            pl.BlockSpec((1, n), lambda j, i: (0, 0)),
        ]

    return pl.pallas_call(
        functools.partial(_linear_kernel, act=act,
                          ln_eps=(ln_eps if fuse_ln else None)),
        out_shape=jax.ShapeDtypeStruct((m, n), out_dtype),
        grid=(n // tn, m // tm),
        in_specs=in_specs,
        out_specs=pl.BlockSpec((tm, tn), lambda j, i: (i, j)),
        compiler_params=pltpu.CompilerParams(
            dimension_semantics=("parallel", "parallel"),
            vmem_limit_bytes=32 * 1024 * 1024),
    )(*inputs)


def _ln_kernel(x_ref, g_ref, b_ref, o_ref, *, eps):
    x = x_ref[...]
    mu = jnp.mean(x, axis=-1, keepdims=True)
    var = jnp.mean((x - mu) ** 2, axis=-1, keepdims=True)
    y = (x - mu) * jax.lax.rsqrt(var + eps) * g_ref[...] + b_ref[...]
    o_ref[...] = y.astype(o_ref.dtype)


def layernorm(x, gamma, beta, eps=1e-12):
    """Standalone LayerNorm (used only for the embedding output)."""
    m, h = x.shape
    tm = _tile(m, 512, 8)
    row_spec = pl.BlockSpec((tm, h), lambda i: (i, 0))
    vec_spec = pl.BlockSpec((1, h), lambda i: (0, 0))
    return pl.pallas_call(
        functools.partial(_ln_kernel, eps=eps),
        out_shape=jax.ShapeDtypeStruct((m, h), jnp.float32),
        grid=(m // tm,),
        in_specs=[row_spec, vec_spec, vec_spec],
        out_specs=row_spec,
        compiler_params=pltpu.CompilerParams(dimension_semantics=("parallel",)),
    )(x, gamma.reshape(1, h).astype(jnp.float32),
      beta.reshape(1, h).astype(jnp.float32))


def _attention_kernel(q_ref, k_ref, v_ref, m_ref, o_ref, *, scale, hpb, dh):
    mask = m_ref[...]                       # (1, S) f32 additive mask (key axis)
    for i in range(hpb):                    # static loop over heads in this block
        sl = slice(i * dh, (i + 1) * dh)
        qh = q_ref[:, sl] * scale           # fold softmax scale into q (S x dh mul)
        kh = k_ref[:, sl]
        vh = v_ref[:, sl]
        # scores: contract head_dim of both operands (no explicit k.T / XLU copy)
        s = jax.lax.dot_general(qh, kh, (((1,), (1,)), ((), ())),
                                preferred_element_type=jnp.float32)
        s = s + mask
        s = s - jnp.max(s, axis=-1, keepdims=True)
        p = jnp.exp(s)
        p = p * pl.reciprocal(jnp.sum(p, axis=-1, keepdims=True), approx=True)
        ctx = jnp.dot(p.astype(vh.dtype), vh, preferred_element_type=jnp.float32)
        o_ref[:, sl] = ctx.astype(o_ref.dtype)   # direct per-head store, no concat


def attention(qkv, mask_b1s, nh):
    """qkv: [B, S, 3H] bf16 (q|k|v packed along last axis).
    mask_b1s: [B, 1, S] additive f32. Output: [B, S, H] bf16.

    The head split is expressed through BlockSpec index maps into the packed 3H
    axis whenever the per-program head-group width is a multiple of 128 lanes,
    so q/k/v are never materialized separately in HBM. Grid is a single flat
    parallel axis of size B * head_groups.
    """
    B, S, H3 = qkv.shape
    H = H3 // 3
    dh = H // nh
    assert nh * dh == H
    scale = 1.0 / math.sqrt(dh)
    hpb = _pick_heads_per_block(nh, dh)
    G = nh // hpb
    wq = hpb * dh

    spec_sel = pl.BlockSpec((pl.Squeezed(), S, wq), lambda i: (i // G, 0, i % G))
    spec_msk = pl.BlockSpec((pl.Squeezed(), 1, S), lambda i: (i // G, 0, 0))
    spec_out = pl.BlockSpec((pl.Squeezed(), S, wq), lambda i: (i // G, 0, i % G))

    if wq % 128 == 0:
        # q/k/v come straight out of the fused tensor via offset block indices.
        spec_q = spec_sel
        spec_k = pl.BlockSpec((pl.Squeezed(), S, wq),
                              lambda i: (i // G, 0, G + i % G))
        spec_v = pl.BlockSpec((pl.Squeezed(), S, wq),
                              lambda i: (i // G, 0, 2 * G + i % G))
        operands = (qkv, qkv, qkv, mask_b1s)
    else:
        # Tiny-H fallback (lane width < 128): slice in JAX, same kernel body.
        q = qkv[..., :H]
        k = qkv[..., H:2 * H]
        v = qkv[..., 2 * H:]
        spec_q = spec_k = spec_v = spec_sel
        operands = (q, k, v, mask_b1s)

    return pl.pallas_call(
        functools.partial(_attention_kernel, scale=scale, hpb=hpb, dh=dh),
        out_shape=jax.ShapeDtypeStruct((B, S, H), jnp.bfloat16),
        grid=(B * G,),
        in_specs=[spec_q, spec_k, spec_v, spec_msk],
        out_specs=spec_out,
        compiler_params=pltpu.CompilerParams(dimension_semantics=("parallel",)),
    )(*operands)


# ----------------------------- parameter init ------------------------------

def init_params(cfg, seed=1234):
    key = jax.random.PRNGKey(seed)
    state = {"key": key}

    def nxt():
        state["key"], sub = jax.random.split(state["key"])
        return sub

    std = 0.02
    H, I = cfg["hidden_size"], cfg["intermediate_size"]
    p = {
        "word_emb": jax.random.normal(nxt(), (cfg["vocab_size"], H)) * std,
        "pos_emb": jax.random.normal(nxt(), (cfg["max_position_embeddings"], H)) * std,
        "type_emb": jax.random.normal(nxt(), (cfg["type_vocab_size"], H)) * std,
        "emb_ln_g": jnp.ones((H,), jnp.float32),
        "emb_ln_b": jnp.zeros((H,), jnp.float32),
        "pool_w": jax.random.normal(nxt(), (H, H)) * std,
        "pool_b": jnp.zeros((H,), jnp.float32),
        "layers": [],
    }
    for _ in range(cfg["num_layers"]):
        # fused QKV: [H, 3H] weight, [3H] bias (q | k | v order)
        layer = {
            "qkv_w": jax.random.normal(nxt(), (H, 3 * H)) * std,
            "qkv_b": jnp.zeros((3 * H,), jnp.float32),
            "o_w": jax.random.normal(nxt(), (H, H)) * std, "o_b": jnp.zeros((H,)),
            "attn_ln_g": jnp.ones((H,)), "attn_ln_b": jnp.zeros((H,)),
            "i_w": jax.random.normal(nxt(), (H, I)) * std, "i_b": jnp.zeros((I,)),
            "out_w": jax.random.normal(nxt(), (I, H)) * std, "out_b": jnp.zeros((H,)),
            "out_ln_g": jnp.ones((H,)), "out_ln_b": jnp.zeros((H,)),
        }
        p["layers"].append(layer)
    return p


# ------------------------------ model forward ------------------------------

def bert_infini_forward(params, cfg, input_ids, attention_mask):
    B, S = input_ids.shape
    H = cfg["hidden_size"]
    nh = cfg["num_heads"]
    eps = cfg["eps"]

    # reset_memory(batch_size): per-example zero [H, H] memory matrices
    # (never read/updated within the reference forward).
    memory_keys = jnp.zeros((B, H, H), jnp.float32)
    memory_values = jnp.zeros((B, H, H), jnp.float32)

    # Embeddings (gathers are plain-JAX glue), then the single standalone LayerNorm.
    pos_ids = jnp.arange(S)
    tok_type = jnp.zeros((B, S), jnp.int32)
    emb = (params["word_emb"][input_ids]
           + params["pos_emb"][pos_ids][None, :, :]
           + params["type_emb"][tok_type])
    x = emb.reshape(B * S, H).astype(jnp.float32)
    x = layernorm(x, params["emb_ln_g"], params["emb_ln_b"], eps)

    # Extended mask kept compact at [B, 1, S]; broadcast happens inside the kernel.
    add_mask = ((1.0 - attention_mask.astype(jnp.float32)) * -10000.0).reshape(B, 1, S)

    for layer in params["layers"]:
        # Fused Q/K/V projection, emitted directly in bf16 (consumer is bf16 MXU).
        qkv = linear(x, layer["qkv_w"], layer["qkv_b"],
                     out_dtype=jnp.bfloat16)                       # [B*S, 3H] bf16
        ctx = attention(qkv.reshape(B, S, 3 * H), add_mask, nh)    # [B, S, H] bf16
        ctx = ctx.reshape(B * S, H)

        # Attention output projection + residual + LayerNorm fused in one kernel.
        x = linear(ctx, layer["o_w"], layer["o_b"],
                   residual=x, ln_gamma=layer["attn_ln_g"],
                   ln_beta=layer["attn_ln_b"], ln_eps=eps)         # [B*S, H] f32

        # FFN: GELU intermediate in bf16; output projection + residual + LN fused.
        inter = linear(x, layer["i_w"], layer["i_b"], act="gelu",
                       out_dtype=jnp.bfloat16)                     # [B*S, I] bf16
        x = linear(inter, layer["out_w"], layer["out_b"],
                   residual=x, ln_gamma=layer["out_ln_g"],
                   ln_beta=layer["out_ln_b"], ln_eps=eps)          # [B*S, H] f32

    sequence_output = x.reshape(B, S, H)
    pooled_output = linear(sequence_output[:, 0, :], params["pool_w"],
                           params["pool_b"], act="tanh")
    return sequence_output, pooled_output, memory_keys, memory_values


# ----------------------------------- main -----------------------------------

if __name__ == "__main__":
    key = jax.random.PRNGKey(0)
    k_ids, _ = jax.random.split(key)
    B, S = 2, 8
    input_ids = jax.random.randint(k_ids, (B, S), 0, 100, dtype=jnp.int32)
    attention_mask = jnp.ones((B, S), jnp.int32).at[1, -2:].set(0)

    # Config 1: tiny hidden size (exercises the small-H attention fallback path).
    cfg1 = dict(vocab_size=100, hidden_size=32, num_layers=2, num_heads=4,
                intermediate_size=64, max_position_embeddings=16,
                type_vocab_size=2, eps=1e-12)
    p1 = init_params(cfg1, seed=1234)
    s1, pool1, mk1, mv1 = bert_infini_forward(p1, cfg1, input_ids, attention_mask)
    jax.block_until_ready((s1, pool1, mk1, mv1))
    assert s1.shape == (B, S, 32) and pool1.shape == (B, 32)
    assert mk1.shape == (B, 32, 32) and mv1.shape == (B, 32, 32)
    assert bool(jnp.all(jnp.isfinite(s1))) and bool(jnp.all(jnp.isfinite(pool1)))

    # Config 2: head_dim=128 (exercises the fused-qkv BlockSpec head-split path).
    cfg2 = dict(vocab_size=100, hidden_size=256, num_layers=1, num_heads=2,
                intermediate_size=512, max_position_embeddings=16,
                type_vocab_size=2, eps=1e-12)
    p2 = init_params(cfg2, seed=4321)
    s2, pool2, mk2, mv2 = bert_infini_forward(p2, cfg2, input_ids, attention_mask)
    jax.block_until_ready((s2, pool2, mk2, mv2))
    assert s2.shape == (B, S, 256) and pool2.shape == (B, 256)
    assert mk2.shape == (B, 256, 256) and mv2.shape == (B, 256, 256)
    assert bool(jnp.all(jnp.isfinite(s2))) and bool(jnp.all(jnp.isfinite(pool2)))

    print("KERNEL_OK")
</pallas_src>

<mosaic_0001>
module attributes {stable_mosaic.version = 11 : i64} {
  func.func @_ln_kernel(%arg0: i32, %arg1: memref<16x32xf32, #tpu.memory_space<vmem>>, %arg2: memref<1x32xf32, #tpu.memory_space<vmem>>, %arg3: memref<1x32xf32, #tpu.memory_space<vmem>>, %arg4: memref<16x32xf32, #tpu.memory_space<vmem>>) attributes {dimension_semantics = [#tpu.dimension_semantics<parallel>], iteration_bounds = array<i64: 1>, scalar_prefetch = 0 : i64, scratch_operands = 0 : i64, tpu.core_type = #tpu.core_type<tc>, window_params = [{transform_indices = @transform_0, window_bounds = array<i64: 16, 32>}, {pipeline_mode = #tpu.pipeline_mode<synchronous>, transform_indices = @transform_1, window_bounds = array<i64: 1, 32>}, {pipeline_mode = #tpu.pipeline_mode<synchronous>, transform_indices = @transform_2, window_bounds = array<i64: 1, 32>}, {transform_indices = @transform_3, window_bounds = array<i64: 16, 32>}]} {
    %c0 = arith.constant 0 : index
    %c0_0 = arith.constant 0 : index
    %0 = vector.load %arg1[%c0, %c0_0] : memref<16x32xf32, #tpu.memory_space<vmem>>, vector<16x32xf32>
    %cst = arith.constant dense<0.000000e+00> : vector<16xf32>
    %1 = vector.multi_reduction <add>, %0, %cst [1] : vector<16x32xf32> to vector<16xf32>
    %2 = vector.shape_cast %1 : vector<16xf32> to vector<16x1xf32>
    %cst_1 = arith.constant 3.200000e+01 : f32
    %3 = vector.broadcast %cst_1 : f32 to vector<16x1xf32>
    %4 = arith.divf %2, %3 : vector<16x1xf32>
    %5 = vector.broadcast %4 : vector<16x1xf32> to vector<16x32xf32>
    %6 = arith.subf %0, %5 : vector<16x32xf32>
    %7 = arith.mulf %6, %6 : vector<16x32xf32>
    %cst_2 = arith.constant dense<0.000000e+00> : vector<16xf32>
    %8 = vector.multi_reduction <add>, %7, %cst_2 [1] : vector<16x32xf32> to vector<16xf32>
    %9 = vector.shape_cast %8 : vector<16xf32> to vector<16x1xf32>
    %cst_3 = arith.constant 3.200000e+01 : f32
    %10 = vector.broadcast %cst_3 : f32 to vector<16x1xf32>
    %11 = arith.divf %9, %10 : vector<16x1xf32>
    %12 = vector.broadcast %4 : vector<16x1xf32> to vector<16x32xf32>
    %13 = arith.subf %0, %12 : vector<16x32xf32>
    %cst_4 = arith.constant 9.99999996E-13 : f32
    %14 = vector.broadcast %cst_4 : f32 to vector<16x1xf32>
    %15 = arith.addf %11, %14 : vector<16x1xf32>
    %16 = math.rsqrt %15 : vector<16x1xf32>
    %17 = vector.broadcast %16 : vector<16x1xf32> to vector<16x32xf32>
    %18 = arith.mulf %13, %17 : vector<16x32xf32>
    %c0_5 = arith.constant 0 : index
    %c0_6 = arith.constant 0 : index
    %19 = vector.load %arg2[%c0_5, %c0_6] : memref<1x32xf32, #tpu.memory_space<vmem>>, vector<1x32xf32>
    %20 = vector.broadcast %19 : vector<1x32xf32> to vector<16x32xf32>
    %21 = arith.mulf %18, %20 : vector<16x32xf32>
    %c0_7 = arith.constant 0 : index
    %c0_8 = arith.constant 0 : index
    %22 = vector.load %arg3[%c0_7, %c0_8] : memref<1x32xf32, #tpu.memory_space<vmem>>, vector<1x32xf32>
    %23 = vector.broadcast %22 : vector<1x32xf32> to vector<16x32xf32>
    %24 = arith.addf %21, %23 : vector<16x32xf32>
    %c0_9 = arith.constant 0 : index
    %c0_10 = arith.constant 0 : index
    %25 = vector.load %arg4[%c0_9, %c0_10] : memref<16x32xf32, #tpu.memory_space<vmem>>, vector<16x32xf32>
    tpu.vector_store %arg4[%c0_9, %c0_10], %24 {strides = array<i32>} : memref<16x32xf32, #tpu.memory_space<vmem>>, vector<16x32xf32>,
    return
  }
  func.func @transform_0(%arg0: i32) -> (i32, i32) {
    %c0_i32 = arith.constant 0 : i32
    %c0_i32_0 = arith.constant 0 : i32
    return %arg0, %c0_i32 : i32, i32
  }
  func.func @transform_1(%arg0: i32) -> (i32, i32) {
    %c0_i32 = arith.constant 0 : i32
    %c0_i32_0 = arith.constant 0 : i32
    %c0_i32_1 = arith.constant 0 : i32
    return %c0_i32, %c0_i32_0 : i32, i32
  }
  func.func @transform_2(%arg0: i32) -> (i32, i32) {
    %c0_i32 = arith.constant 0 : i32
    %c0_i32_0 = arith.constant 0 : i32
    %c0_i32_1 = arith.constant 0 : i32
    return %c0_i32, %c0_i32_0 : i32, i32
  }
  func.func @transform_3(%arg0: i32) -> (i32, i32) {
    %c0_i32 = arith.constant 0 : i32
    %c0_i32_0 = arith.constant 0 : i32
    return %arg0, %c0_i32 : i32, i32
  }
}

</mosaic_0001>

<llo_original>
// kernel: tpu_custom_call.1
$region0: #{tpu_custom_call.1}
  #allocation0 [shape = 'u32[]', space=smem, size = 0x4, offset = 0x4, fixed_abs, tag = 'smem constant byte address 0x4 - core index']
  #allocation1 [shape = 'u32[144,128]{1,0:T(1,128)}', space=vmem, size = 0x12000, scoped, tag = 'internal scratch']
  %s0 = inlined_call_operand.hbm [shape: f32[16,32], index: 0, kind: input, shape index: {}]
  %s1 = inlined_call_operand.vmem [shape: f32[1,32], index: 1, kind: input, shape index: {}]
  %s2 = inlined_call_operand.vmem [shape: f32[1,32], index: 2, kind: input, shape index: {}]
  %s3 = inlined_call_operand.hbm [shape: f32[16,32], index: 3, kind: output, shape index: {}]
  %s4 = sld [smem:[#allocation0]]
  $region26: #{tpu_custom_call.1} parent=0
    _
  %s6 = ssub.s32 1, %s4
  %s7 = scalar_select 0, %s6, %s4
  $region1: #{tpu_custom_call.1} parent=0
    #allocation2 [shape = 'u8[8192]{0}', space=vmem, size = 0x2000, scoped, tag = 'input window, operand 0, single buffered']
    #allocation3 [shape = 's32[1]{0}', space=sflag, size = 0x4, scoped, tag = 'scoped memory for tpu_custom_call.1']
    #allocation4 [shape = 's32[1]{0}', space=sflag, size = 0x4, scoped, tag = 'scoped memory for tpu_custom_call.1']
    #allocation5 [shape = 'u8[8192]{0}', space=vmem, size = 0x2000, scoped, tag = 'output window, operand 0, single buffered']
    %8 = vsyncpa [#allocation3], 0
    %9 = vsyncpa [#allocation4], 0
    // Predicated region
    $region2: #{tpu_custom_call.1} parent=1 // pred_check
      _
    $region3: #{tpu_custom_call.1} parent=1 // pred_check_branch
      %11 = sbr.rel (0) target = $region5
    $region4: #{tpu_custom_call.1} parent=1 // pred_region
      %s13 = ssub.s32 256, 256
      %14 = vsyncadd [#allocation3], %s13
      %s15 = sshll.u32 [#allocation2], 4
      %s16 = int_to_ptr.vmem [resolvable:$true] %s15
      %21 = dma.hbm_to_vmem [thread:$0]  %s0, 256, %s16, [#allocation3], 128, 128, 8
    $region5: #{tpu_custom_call.1} parent=1 // pred_fallthru
      _
    // Predicated region
    $region6: #{tpu_custom_call.1} parent=1 // pred_check
      _
    $region7: #{tpu_custom_call.1} parent=1 // pred_check_branch
      %23 = sbr.rel (0) target = $region9
    $region8: #{tpu_custom_call.1} parent=1 // pred_region
      _
    $region9: #{tpu_custom_call.1} parent=1 // pred_fallthru
      _
    // Predicated region
    $region10: #{tpu_custom_call.1} parent=1 // pred_check
      _
    $region11: #{tpu_custom_call.1} parent=1 // pred_check_branch
      %25 = sbr.rel (0) target = $region13
    $region12: #{tpu_custom_call.1} parent=1 // pred_region
      _
    $region13: #{tpu_custom_call.1} parent=1 // pred_fallthru
      _
    // Predicated region
    $region14: #{tpu_custom_call.1} parent=1 // pred_check
      _
    $region15: #{tpu_custom_call.1} parent=1 // pred_check_branch
      %27 = sbr.rel (0) target = $region17
    $region16: #{tpu_custom_call.1} parent=1 // pred_region
      %28 = dma.done [#allocation3], 256
    $region17: #{tpu_custom_call.1} parent=1 // pred_fallthru
      _
    %v29 = vld [vmem:[#allocation2] sm:$0xff]
    %v30 = vld [vmem:[#allocation2 + $0x8] sm:$0xff]
    %vm31 = vcmask 261120
    %v32 = vsel %vm31, %v29, 0.0
    %33 = vadd.xlane.f32.xlu0 %v32
    %v34 = vpop.xlane.xlu0 %33
    %v35 = vsel %vm31, %v30, 0.0
    %36 = vadd.xlane.f32.xlu0 %v35
    %v37 = vpop.xlane.xlu0 %36
    %v38 = vrcp.pop 32.0
    %v39 = vmul.f32 %v34, %v38
    %v40 = vmul.f32 %v37, %v38
    %v41 = vsub.f32 %v29, %v39
    %v42 = vsub.f32 %v30, %v40
    %v43 = vmul.f32 %v41, %v41
    %v44 = vmul.f32 %v42, %v42
    %v45 = vsel %vm31, %v43, 0.0
    %46 = vadd.xlane.f32.xlu0 %v45
    %v47 = vpop.xlane.xlu0 %46
    %v48 = vsel %vm31, %v44, 0.0
    %49 = vadd.xlane.f32.xlu0 %v48
    %v50 = vpop.xlane.xlu0 %49
    %v51 = vmul.f32 %v47, %v38
    %v52 = vmul.f32 %v50, %v38
    %v53 = vadd.f32 %v51, 1e-12
    %v54 = vadd.f32 %v52, 1e-12
    %v55 = vrsqrt.pop %v53
    %v56 = vrsqrt.pop %v54
    %v57 = vmul.f32 %v41, %v55
    %v58 = vmul.f32 %v42, %v56
    %v59 = vld [vmem:[%s1] sm:$0x1]
    %v61 = vlaneseq
    %v62 = vshrl.u32 %v61, 7
    %v63 = vsub.s32 0, %v62
    %v64 = vrot.slane %v59, %v63
    %v66 = vmul.f32 %v57, %v64
    %v67 = vmul.f32 %v58, %v64
    %v68 = vld [vmem:[%s2] sm:$0x1]
    %v70 = vlaneseq
    %v71 = vshrl.u32 %v70, 7
    %v72 = vsub.s32 0, %v71
    %v73 = vrot.slane %v68, %v72
    %v75 = vadd.f32 %v66, %v73
    %v76 = vadd.f32 %v67, %v73
    %77 = vst.msk [vmem:[#allocation5] sm:$0xff] %vm31, %v75
    %78 = vst.msk [vmem:[#allocation5 + $0x8] sm:$0xff] %vm31, %v76
    // Predicated region
    $region18: #{tpu_custom_call.1} parent=1 // pred_check
      _
    $region19: #{tpu_custom_call.1} parent=1 // pred_check_branch
      %80 = sbr.rel (0) target = $region21
    $region20: #{tpu_custom_call.1} parent=1 // pred_region
      %s82 = ssub.s32 256, 256
      %83 = vsyncadd [#allocation4], %s82
      %s84 = sshll.u32 [#allocation5], 4
      %s85 = int_to_ptr.vmem [resolvable:$true] %s84
      %90 = dma.vmem_to_hbm [thread:$0]  %s85, 256, %s3, [#allocation4], 128, 128, 8
    $region21: #{tpu_custom_call.1} parent=1 // pred_fallthru
      _
    // Predicated region
    $region22: #{tpu_custom_call.1} parent=1 // pred_check
      _
    $region23: #{tpu_custom_call.1} parent=1 // pred_check_branch
      %92 = sbr.rel (0) target = $region25
    $region24: #{tpu_custom_call.1} parent=1 // pred_region
      %93 = dma.done [#allocation4], 256
    $region25: #{tpu_custom_call.1} parent=1 // pred_fallthru
      _
    %94 = vsyncpa [#allocation3], 1
    %95 = vsyncpa [#allocation4], 1

</llo_original>
